<compile_context>
chip_gen: v5e
topology: v5e:2x2
jax: 0.10.0
libtpu: 0.0.40
codegen_flags: <defaults>
</compile_context>

<pallas_src>
import math

import jax
import jax.numpy as jnp
from jax.experimental import pallas as pl
from jax.experimental.pallas import tpu as pltpu

_EPS = 1e-6


def _make_cia_kernel(thresh):
    """Kernel factory: thresh-derived constants baked in as closure floats."""
    thresh = float(thresh)
    c0 = math.log(thresh) - 0.5          # log(thresh) - 1/2
    c1 = 0.5 / (thresh * thresh)         # 1 / (2 * thresh^2)

    def kernel(pred_ref, target_ref, out_ref):
        k = pl.program_id(2)

        # Output block is resident across the innermost (reduction) axis:
        # zero it on the first H-tile, accumulate raw partial sums after.
        @pl.when(k == 0)
        def _():
            out_ref[...] = jnp.zeros_like(out_ref)

        p0 = pred_ref[0].astype(jnp.float32)        # (TH, W)
        p1 = pred_ref[1].astype(jnp.float32)        # (TH, W)
        tgt = target_ref[...].astype(jnp.float32)   # class codes {0,1,2}

        m0 = tgt > 0.0
        m1 = tgt > 1.0
        cls0 = m0.astype(jnp.float32)
        cls1 = m1.astype(jnp.float32)

        # One log per channel: select the operand by the class mask.
        #   cls * lx     == cls * log(p + eps)
        #   (1-cls) * lx == (1-cls) * log(1 - p + eps)
        lx0 = jnp.log(jnp.where(m0, p0, 1.0 - p0) + _EPS)
        lx1 = jnp.log(jnp.where(m1, p1, 1.0 - p1) + _EPS)

        # Self-training term: certain -> log(pt+eps);
        # uncertain -> log(thresh) - (1 - (pt/thresh)^2)/2 == c0 + c1*pt^2.
        pt = cls1 * p1 + cls0 * p0
        st = jnp.where(pt > thresh, jnp.log(pt + _EPS), c0 + c1 * pt * pt)

        # Raw per-tile partial sums; normalization happens outside the kernel.
        s_pos0 = jnp.sum(cls0 * lx0)
        s_neg0 = jnp.sum(lx0) - s_pos0
        s_pos1 = jnp.sum(cls1 * lx1)
        s_neg1 = jnp.sum(lx1) - s_pos1
        n0 = jnp.sum(cls0)
        n1 = jnp.sum(cls1)
        s_st = jnp.sum(st)

        # Pack the 7 scalars into sublane rows 0..6 of one (8,128) vreg and
        # accumulate directly into the resident output block.
        sub = jax.lax.broadcasted_iota(jnp.int32, (8, 128), 0)
        partial = (jnp.where(sub == 0, s_pos0, 0.0)
                   + jnp.where(sub == 1, s_neg0, 0.0)
                   + jnp.where(sub == 2, s_pos1, 0.0)
                   + jnp.where(sub == 3, s_neg1, 0.0)
                   + jnp.where(sub == 4, n0, 0.0)
                   + jnp.where(sub == 5, n1, 0.0)
                   + jnp.where(sub == 6, s_st, 0.0))
        out_ref[...] += partial

    return kernel


def _pick_tile_h(H, W, pred_itemsize):
    """Largest multiple-of-8 divisor of H whose (pred+target) window stays
    under ~5 MiB (Pallas double-buffers -> ~10 MiB in flight). Prefers full-H."""
    budget = 5 * 1024 * 1024

    def window_bytes(th):
        return th * W * (2 * pred_itemsize + 4)

    if H % 8 != 0:
        return H                     # full-dim block is always legal
    for th in range(H, 7, -8):
        if H % th == 0 and window_bytes(th) <= budget:
            return th
    return 8                         # only reachable for absurdly wide images


def cia_forward(pred, target, w, thresh, lw, *, tile_h=None):
    """Equivalent of CIA().forward(pred, target, w, thresh, lw).

    `thresh` must be a static Python scalar > 0 (folded into the kernel at
    trace time). NOTE: _st_loss hard-codes /512/512 regardless of H, W —
    faithful to the PyTorch reference.
    """
    B, C, H, W = pred.shape
    assert C == 2, pred.shape

    pred_itemsize = jnp.dtype(pred.dtype).itemsize
    if tile_h is None:
        tile_h = _pick_tile_h(H, W, pred_itemsize)
        n_k = H // tile_h
        # Prefer an even number of H-tiles so the second 'parallel' grid axis
        # can keep both v7x TensorCores busy even at B == 1.
        if n_k % 2 == 1 and tile_h % 16 == 0:
            tile_h //= 2
            n_k *= 2
    else:
        assert H % tile_h == 0, (H, tile_h)
        n_k = H // tile_h

    n_splits = 2 if (n_k >= 2 and n_k % 2 == 0) else 1
    k_per = n_k // n_splits

    # Targets as int8 class codes {0,1,2} (3x less HBM traffic than f32) when
    # the H-tile is 32-row aligned (int8 native tiling); f32 fallback otherwise.
    use_i8 = (tile_h % 32 == 0) or (tile_h == H)
    tdtype = jnp.int8 if use_i8 else jnp.float32
    tgt_codes = (target > 0).astype(tdtype) + (target > 1).astype(tdtype)

    kernel = _make_cia_kernel(thresh)

    out = pl.pallas_call(
        kernel,
        out_shape=jax.ShapeDtypeStruct((B, n_splits, 8, 128), jnp.float32),
        grid=(B, n_splits, k_per),
        in_specs=[
            pl.BlockSpec((pl.Squeezed(), 2, tile_h, W),
                         lambda b, s, k: (b, 0, s * k_per + k, 0)),       # pred
            pl.BlockSpec((pl.Squeezed(), tile_h, W),
                         lambda b, s, k: (b, s * k_per + k, 0)),          # target codes
        ],
        out_specs=pl.BlockSpec((pl.Squeezed(), pl.Squeezed(), 8, 128),
                               lambda b, s, k: (b, s, 0, 0)),
        compiler_params=pltpu.CompilerParams(
            dimension_semantics=("parallel", "parallel", "arbitrary"),
            vmem_limit_bytes=32 * 1024 * 1024),
    )(pred, tgt_codes)

    # Row r, lane 0 of each (b, split) block holds one accumulated scalar.
    acc = out[:, :, :, 0].sum(axis=1)       # (B, 8)
    s_pos0, s_neg0 = acc[:, 0], acc[:, 1]
    s_pos1, s_neg1 = acc[:, 2], acc[:, 3]
    n0p, n1p, s_st = acc[:, 4], acc[:, 5], acc[:, 6]

    hw = float(H * W)
    I0 = -(s_pos0 / (n0p + 1.0) + s_neg0 / (hw - n0p + 1.0))
    I1 = -(s_pos1 / (n1p + 1.0) + s_neg1 / (hw - n1p + 1.0))
    ST = -s_st

    cia = jnp.sum((1.0 - w) * I0 + w * I1) / B
    st = jnp.sum(ST) / 512.0 / 512.0 / B    # faithful hard-coded /512/512
    return cia + lw * st


def _ref_forward(pred, target, w, thresh, lw):
    """Pure-JAX reference mirroring the PyTorch code."""
    pred = pred.astype(jnp.float32)
    target = target.astype(jnp.float32)
    B = pred.shape[0]

    cls0 = (target > 0.0).astype(jnp.float32)
    cls1 = (target > 1.0).astype(jnp.float32)
    p0 = pred[:, 0]
    p1 = pred[:, 1]

    n0p = jnp.sum(cls0, axis=(1, 2), keepdims=True)
    n0n = jnp.sum(1.0 - cls0, axis=(1, 2), keepdims=True)
    n1p = jnp.sum(cls1, axis=(1, 2), keepdims=True)
    n1n = jnp.sum(1.0 - cls1, axis=(1, 2), keepdims=True)

    I0 = -jnp.sum(cls0 * jnp.log(p0 + _EPS) / (n0p + 1.0)
                  + (1.0 - cls0) * jnp.log(1.0 - p0 + _EPS) / (n0n + 1.0), axis=(1, 2))
    I1 = -jnp.sum(cls1 * jnp.log(p1 + _EPS) / (n1p + 1.0)
                  + (1.0 - cls1) * jnp.log(1.0 - p1 + _EPS) / (n1n + 1.0), axis=(1, 2))
    cia = jnp.sum((1.0 - w) * I0 + w * I1) / B

    pt = cls1 * p1 + cls0 * p0
    certain = (pt > thresh).astype(jnp.float32)
    st_term = (certain * jnp.log(pt + _EPS)
               + (1.0 - certain) * (jnp.log(jnp.float32(thresh))
                                    - (1.0 - (pt / thresh) ** 2) / 2.0))
    ST = -jnp.sum(st_term, axis=(1, 2))
    st = jnp.sum(ST) / 512.0 / 512.0 / B
    return cia + lw * st


if __name__ == "__main__":
    key = jax.random.PRNGKey(0)
    k1, k2 = jax.random.split(key)

    B, H, W = 2, 64, 256
    # probabilities strictly inside (0,1)
    pred = jax.random.uniform(k1, (B, 2, H, W), jnp.float32, minval=0.05, maxval=0.95)
    # class labels {0,1,2}
    target = jax.random.randint(k2, (B, H, W), 0, 3).astype(jnp.float32)

    w, thresh, lw = 0.7, 0.5, 0.1

    ref = jax.block_until_ready(_ref_forward(pred, target, w, thresh, lw))

    # Auto tiling: half-H tiles, 2 'parallel' H-splits, int8 target codes.
    loss = jax.block_until_ready(cia_forward(pred, target, w, thresh, lw))
    assert jnp.allclose(loss, ref, rtol=1e-4, atol=1e-4), (loss, ref)

    # Forced small tiles: exercises multi-step in-place accumulation into the
    # resident output block and the f32 target fallback path.
    loss2 = jax.block_until_ready(cia_forward(pred, target, w, thresh, lw, tile_h=8))
    assert jnp.allclose(loss2, ref, rtol=1e-4, atol=1e-4), (loss2, ref)

    print("KERNEL_OK")
</pallas_src>

<mosaic_0001>
module attributes {stable_mosaic.version = 11 : i64} {
  func.func @kernel(%arg0: i32, %arg1: i32, %arg2: i32, %arg3: memref<1x2x32x256xf32, #tpu.memory_space<vmem>>, %arg4: memref<1x32x256xi8, #tpu.memory_space<vmem>>, %arg5: memref<1x1x8x128xf32, #tpu.memory_space<vmem>>) attributes {dimension_semantics = [#tpu.dimension_semantics<parallel>, #tpu.dimension_semantics<parallel>, #tpu.dimension_semantics<arbitrary>], iteration_bounds = array<i64: 2, 2, 1>, scalar_prefetch = 0 : i64, scratch_operands = 0 : i64, tpu.core_type = #tpu.core_type<tc>, window_params = [{transform_indices = @transform_0, window_bounds = array<i64: 1, 2, 32, 256>}, {transform_indices = @transform_1, window_bounds = array<i64: 1, 32, 256>}, {transform_indices = @transform_2, window_bounds = array<i64: 1, 1, 8, 128>}]} {
    %c0_i32 = arith.constant 0 : i32
    %0 = arith.cmpi eq, %arg2, %c0_i32 : i32
    %1 = arith.extui %0 : i1 to i32
    %c0_i32_0 = arith.constant 0 : i32
    %2 = arith.cmpi ne, %1, %c0_i32_0 : i32
    scf.if %2 {
      %cst_42 = arith.constant 0.000000e+00 : f32
      %124 = vector.broadcast %cst_42 : f32 to vector<8x128xf32>
      %c0_43 = arith.constant 0 : index
      %c0_44 = arith.constant 0 : index
      %c0_45 = arith.constant 0 : index
      %c0_46 = arith.constant 0 : index
      %125 = vector.load %arg5[%c0_43, %c0_44, %c0_45, %c0_46] : memref<1x1x8x128xf32, #tpu.memory_space<vmem>>, vector<1x1x8x128xf32>
      %126 = vector.shape_cast %125 : vector<1x1x8x128xf32> to vector<8x128xf32>
      %127 = vector.shape_cast %124 : vector<8x128xf32> to vector<1x1x8x128xf32>
      tpu.vector_store %arg5[%c0_43, %c0_44, %c0_45, %c0_46], %127 {strides = array<i32>} : memref<1x1x8x128xf32, #tpu.memory_space<vmem>>, vector<1x1x8x128xf32>,
    } else {
    }
    %c0 = arith.constant 0 : index
    %c0_1 = arith.constant 0 : index
    %c0_2 = arith.constant 0 : index
    %c0_3 = arith.constant 0 : index
    %3 = vector.load %arg3[%c0, %c0_1, %c0_2, %c0_3] : memref<1x2x32x256xf32, #tpu.memory_space<vmem>>, vector<1x1x32x256xf32>
    %4 = vector.shape_cast %3 : vector<1x1x32x256xf32> to vector<32x256xf32>
    %c0_4 = arith.constant 0 : index
    %c1 = arith.constant 1 : index
    %c0_5 = arith.constant 0 : index
    %c0_6 = arith.constant 0 : index
    %5 = vector.load %arg3[%c0_4, %c1, %c0_5, %c0_6] : memref<1x2x32x256xf32, #tpu.memory_space<vmem>>, vector<1x1x32x256xf32>
    %6 = vector.shape_cast %5 : vector<1x1x32x256xf32> to vector<32x256xf32>
    %c0_7 = arith.constant 0 : index
    %c0_8 = arith.constant 0 : index
    %c0_9 = arith.constant 0 : index
    %7 = vector.load %arg4[%c0_7, %c0_8, %c0_9] : memref<1x32x256xi8, #tpu.memory_space<vmem>>, vector<1x32x256xi8>
    %8 = vector.shape_cast %7 : vector<1x32x256xi8> to vector<32x256xi8>
    %9 = arith.sitofp %8 : vector<32x256xi8> to vector<32x256xf32>
    %cst = arith.constant 0.000000e+00 : f32
    %10 = vector.broadcast %cst : f32 to vector<32x256xf32>
    %11 = arith.cmpf ogt, %9, %10 : vector<32x256xf32>
    %cst_10 = arith.constant 1.000000e+00 : f32
    %12 = vector.broadcast %cst_10 : f32 to vector<32x256xf32>
    %13 = arith.cmpf ogt, %9, %12 : vector<32x256xf32>
    %14 = arith.extui %11 : vector<32x256xi1> to vector<32x256xi32>
    %15 = arith.sitofp %14 : vector<32x256xi32> to vector<32x256xf32>
    %16 = arith.extui %13 : vector<32x256xi1> to vector<32x256xi32>
    %17 = arith.sitofp %16 : vector<32x256xi32> to vector<32x256xf32>
    %cst_11 = arith.constant 1.000000e+00 : f32
    %18 = vector.broadcast %cst_11 : f32 to vector<32x256xf32>
    %19 = arith.subf %18, %4 : vector<32x256xf32>
    %20 = arith.select %11, %4, %19 : vector<32x256xi1>, vector<32x256xf32>
    %cst_12 = arith.constant 9.99999997E-7 : f32
    %21 = vector.broadcast %cst_12 : f32 to vector<32x256xf32>
    %22 = arith.addf %20, %21 : vector<32x256xf32>
    %23 = math.log %22 : vector<32x256xf32>
    %cst_13 = arith.constant 1.000000e+00 : f32
    %24 = vector.broadcast %cst_13 : f32 to vector<32x256xf32>
    %25 = arith.subf %24, %6 : vector<32x256xf32>
    %26 = arith.select %13, %6, %25 : vector<32x256xi1>, vector<32x256xf32>
    %cst_14 = arith.constant 9.99999997E-7 : f32
    %27 = vector.broadcast %cst_14 : f32 to vector<32x256xf32>
    %28 = arith.addf %26, %27 : vector<32x256xf32>
    %29 = math.log %28 : vector<32x256xf32>
    %30 = arith.mulf %17, %6 : vector<32x256xf32>
    %31 = arith.mulf %15, %4 : vector<32x256xf32>
    %32 = arith.addf %30, %31 : vector<32x256xf32>
    %cst_15 = arith.constant 5.000000e-01 : f32
    %33 = vector.broadcast %cst_15 : f32 to vector<32x256xf32>
    %34 = arith.cmpf ogt, %32, %33 : vector<32x256xf32>
    %cst_16 = arith.constant 9.99999997E-7 : f32
    %35 = vector.broadcast %cst_16 : f32 to vector<32x256xf32>
    %36 = arith.addf %32, %35 : vector<32x256xf32>
    %37 = math.log %36 : vector<32x256xf32>
    %cst_17 = arith.constant 2.000000e+00 : f32
    %38 = vector.broadcast %cst_17 : f32 to vector<32x256xf32>
    %39 = arith.mulf %38, %32 : vector<32x256xf32>
    %40 = arith.mulf %39, %32 : vector<32x256xf32>
    %cst_18 = arith.constant -1.19314718 : f32
    %41 = vector.broadcast %cst_18 : f32 to vector<32x256xf32>
    %42 = arith.addf %41, %40 : vector<32x256xf32>
    %43 = arith.select %34, %37, %42 : vector<32x256xi1>, vector<32x256xf32>
    %44 = arith.mulf %15, %23 : vector<32x256xf32>
    %45 = vector.shape_cast %44 : vector<32x256xf32> to vector<1x32x256xf32>
    %cst_19 = arith.constant dense<0.000000e+00> : vector<1xf32>
    %46 = vector.multi_reduction <add>, %45, %cst_19 [1, 2] : vector<1x32x256xf32> to vector<1xf32>
    %47 = vector.shape_cast %46 : vector<1xf32> to vector<1x1x1xf32>
    %48 = vector.extract %47[0, 0, 0] : f32 from vector<1x1x1xf32>
    %49 = vector.shape_cast %23 : vector<32x256xf32> to vector<1x32x256xf32>
    %cst_20 = arith.constant dense<0.000000e+00> : vector<1xf32>
    %50 = vector.multi_reduction <add>, %49, %cst_20 [1, 2] : vector<1x32x256xf32> to vector<1xf32>
    %51 = vector.shape_cast %50 : vector<1xf32> to vector<1x1x1xf32>
    %52 = vector.extract %51[0, 0, 0] : f32 from vector<1x1x1xf32>
    %53 = arith.subf %52, %48 : f32
    %54 = arith.mulf %17, %29 : vector<32x256xf32>
    %55 = vector.shape_cast %54 : vector<32x256xf32> to vector<1x32x256xf32>
    %cst_21 = arith.constant dense<0.000000e+00> : vector<1xf32>
    %56 = vector.multi_reduction <add>, %55, %cst_21 [1, 2] : vector<1x32x256xf32> to vector<1xf32>
    %57 = vector.shape_cast %56 : vector<1xf32> to vector<1x1x1xf32>
    %58 = vector.extract %57[0, 0, 0] : f32 from vector<1x1x1xf32>
    %59 = vector.shape_cast %29 : vector<32x256xf32> to vector<1x32x256xf32>
    %cst_22 = arith.constant dense<0.000000e+00> : vector<1xf32>
    %60 = vector.multi_reduction <add>, %59, %cst_22 [1, 2] : vector<1x32x256xf32> to vector<1xf32>
    %61 = vector.shape_cast %60 : vector<1xf32> to vector<1x1x1xf32>
    %62 = vector.extract %61[0, 0, 0] : f32 from vector<1x1x1xf32>
    %63 = arith.subf %62, %58 : f32
    %64 = vector.shape_cast %15 : vector<32x256xf32> to vector<1x32x256xf32>
    %cst_23 = arith.constant dense<0.000000e+00> : vector<1xf32>
    %65 = vector.multi_reduction <add>, %64, %cst_23 [1, 2] : vector<1x32x256xf32> to vector<1xf32>
    %66 = vector.shape_cast %65 : vector<1xf32> to vector<1x1x1xf32>
    %67 = vector.extract %66[0, 0, 0] : f32 from vector<1x1x1xf32>
    %68 = vector.shape_cast %17 : vector<32x256xf32> to vector<1x32x256xf32>
    %cst_24 = arith.constant dense<0.000000e+00> : vector<1xf32>
    %69 = vector.multi_reduction <add>, %68, %cst_24 [1, 2] : vector<1x32x256xf32> to vector<1xf32>
    %70 = vector.shape_cast %69 : vector<1xf32> to vector<1x1x1xf32>
    %71 = vector.extract %70[0, 0, 0] : f32 from vector<1x1x1xf32>
    %72 = vector.shape_cast %43 : vector<32x256xf32> to vector<1x32x256xf32>
    %cst_25 = arith.constant dense<0.000000e+00> : vector<1xf32>
    %73 = vector.multi_reduction <add>, %72, %cst_25 [1, 2] : vector<1x32x256xf32> to vector<1xf32>
    %74 = vector.shape_cast %73 : vector<1xf32> to vector<1x1x1xf32>
    %75 = vector.extract %74[0, 0, 0] : f32 from vector<1x1x1xf32>
    %76 = tpu.iota {dimensions = array<i32: 0>} : vector<8x128xi32>
    %c0_i32_26 = arith.constant 0 : i32
    %77 = vector.broadcast %c0_i32_26 : i32 to vector<8x128xi32>
    %78 = arith.cmpi eq, %76, %77 : vector<8x128xi32>
    %cst_27 = arith.constant 0.000000e+00 : f32
    %79 = vector.broadcast %48 : f32 to vector<8x128xf32>
    %80 = vector.broadcast %cst_27 : f32 to vector<8x128xf32>
    %81 = arith.select %78, %79, %80 : vector<8x128xi1>, vector<8x128xf32>
    %c1_i32 = arith.constant 1 : i32
    %82 = vector.broadcast %c1_i32 : i32 to vector<8x128xi32>
    %83 = arith.cmpi eq, %76, %82 : vector<8x128xi32>
    %cst_28 = arith.constant 0.000000e+00 : f32
    %84 = vector.broadcast %53 : f32 to vector<8x128xf32>
    %85 = vector.broadcast %cst_28 : f32 to vector<8x128xf32>
    %86 = arith.select %83, %84, %85 : vector<8x128xi1>, vector<8x128xf32>
    %87 = arith.addf %81, %86 : vector<8x128xf32>
    %c2_i32 = arith.constant 2 : i32
    %88 = vector.broadcast %c2_i32 : i32 to vector<8x128xi32>
    %89 = arith.cmpi eq, %76, %88 : vector<8x128xi32>
    %cst_29 = arith.constant 0.000000e+00 : f32
    %90 = vector.broadcast %58 : f32 to vector<8x128xf32>
    %91 = vector.broadcast %cst_29 : f32 to vector<8x128xf32>
    %92 = arith.select %89, %90, %91 : vector<8x128xi1>, vector<8x128xf32>
    %93 = arith.addf %87, %92 : vector<8x128xf32>
    %c3_i32 = arith.constant 3 : i32
    %94 = vector.broadcast %c3_i32 : i32 to vector<8x128xi32>
    %95 = arith.cmpi eq, %76, %94 : vector<8x128xi32>
    %cst_30 = arith.constant 0.000000e+00 : f32
    %96 = vector.broadcast %63 : f32 to vector<8x128xf32>
    %97 = vector.broadcast %cst_30 : f32 to vector<8x128xf32>
    %98 = arith.select %95, %96, %97 : vector<8x128xi1>, vector<8x128xf32>
    %99 = arith.addf %93, %98 : vector<8x128xf32>
    %c4_i32 = arith.constant 4 : i32
    %100 = vector.broadcast %c4_i32 : i32 to vector<8x128xi32>
    %101 = arith.cmpi eq, %76, %100 : vector<8x128xi32>
    %cst_31 = arith.constant 0.000000e+00 : f32
    %102 = vector.broadcast %67 : f32 to vector<8x128xf32>
    %103 = vector.broadcast %cst_31 : f32 to vector<8x128xf32>
    %104 = arith.select %101, %102, %103 : vector<8x128xi1>, vector<8x128xf32>
    %105 = arith.addf %99, %104 : vector<8x128xf32>
    %c5_i32 = arith.constant 5 : i32
    %106 = vector.broadcast %c5_i32 : i32 to vector<8x128xi32>
    %107 = arith.cmpi eq, %76, %106 : vector<8x128xi32>
    %cst_32 = arith.constant 0.000000e+00 : f32
    %108 = vector.broadcast %71 : f32 to vector<8x128xf32>
    %109 = vector.broadcast %cst_32 : f32 to vector<8x128xf32>
    %110 = arith.select %107, %108, %109 : vector<8x128xi1>, vector<8x128xf32>
    %111 = arith.addf %105, %110 : vector<8x128xf32>
    %c6_i32 = arith.constant 6 : i32
    %112 = vector.broadcast %c6_i32 : i32 to vector<8x128xi32>
    %113 = arith.cmpi eq, %76, %112 : vector<8x128xi32>
    %cst_33 = arith.constant 0.000000e+00 : f32
    %114 = vector.broadcast %75 : f32 to vector<8x128xf32>
    %115 = vector.broadcast %cst_33 : f32 to vector<8x128xf32>
    %116 = arith.select %113, %114, %115 : vector<8x128xi1>, vector<8x128xf32>
    %117 = arith.addf %111, %116 : vector<8x128xf32>
    %c0_34 = arith.constant 0 : index
    %c0_35 = arith.constant 0 : index
    %c0_36 = arith.constant 0 : index
    %c0_37 = arith.constant 0 : index
    %118 = vector.load %arg5[%c0_34, %c0_35, %c0_36, %c0_37] : memref<1x1x8x128xf32, #tpu.memory_space<vmem>>, vector<1x1x8x128xf32>
    %119 = vector.shape_cast %118 : vector<1x1x8x128xf32> to vector<8x128xf32>
    %120 = arith.addf %119, %117 : vector<8x128xf32>
    %c0_38 = arith.constant 0 : index
    %c0_39 = arith.constant 0 : index
    %c0_40 = arith.constant 0 : index
    %c0_41 = arith.constant 0 : index
    %121 = vector.load %arg5[%c0_38, %c0_39, %c0_40, %c0_41] : memref<1x1x8x128xf32, #tpu.memory_space<vmem>>, vector<1x1x8x128xf32>
    %122 = vector.shape_cast %121 : vector<1x1x8x128xf32> to vector<8x128xf32>
    %123 = vector.shape_cast %120 : vector<8x128xf32> to vector<1x1x8x128xf32>
    tpu.vector_store %arg5[%c0_38, %c0_39, %c0_40, %c0_41], %123 {strides = array<i32>} : memref<1x1x8x128xf32, #tpu.memory_space<vmem>>, vector<1x1x8x128xf32>,
    return
  }
  func.func @transform_0(%arg0: i32, %arg1: i32, %arg2: i32) -> (i32, i32, i32, i32) {
    %c1_i32 = arith.constant 1 : i32
    %0 = arith.muli %arg1, %c1_i32 : i32
    %1 = arith.addi %0, %arg2 : i32
    %c0_i32 = arith.constant 0 : i32
    %c0_i32_0 = arith.constant 0 : i32
    %c0_i32_1 = arith.constant 0 : i32
    return %arg0, %c0_i32, %1, %c0_i32_0 : i32, i32, i32, i32
  }
  func.func @transform_1(%arg0: i32, %arg1: i32, %arg2: i32) -> (i32, i32, i32) {
    %c1_i32 = arith.constant 1 : i32
    %0 = arith.muli %arg1, %c1_i32 : i32
    %1 = arith.addi %0, %arg2 : i32
    %c0_i32 = arith.constant 0 : i32
    %c0_i32_0 = arith.constant 0 : i32
    return %arg0, %1, %c0_i32 : i32, i32, i32
  }
  func.func @transform_2(%arg0: i32, %arg1: i32, %arg2: i32) -> (i32, i32, i32, i32) {
    %c0_i32 = arith.constant 0 : i32
    %c0_i32_0 = arith.constant 0 : i32
    %c0_i32_1 = arith.constant 0 : i32
    return %arg0, %arg1, %c0_i32, %c0_i32_0 : i32, i32, i32, i32
  }
}

</mosaic_0001>

<llo_original>
// kernel: tpu_custom_call.1
$region0: #{tpu_custom_call.1}
  #allocation0 [shape = 'u32[]', space=smem, size = 0x4, offset = 0x4, fixed_abs, tag = 'smem constant byte address 0x4 - core index']
  #allocation1 [shape = 'u32[72,128]{1,0:T(1,128)}', space=vmem, size = 0x9000, scoped, tag = 'internal scratch']
  #allocation8 [shape = 's32[]', space=sflag, size = 0x4, offset = 0, fixed_abs, tag = 'sflag constant byte address 0x0 - dummy sync flag']
  %s0 = inlined_call_operand.hbm [shape: f32[2,2,64,256], index: 0, kind: input, shape index: {}]
  %s1 = inlined_call_operand.hbm [shape: s8[2,64,256], index: 1, kind: input, shape index: {}]
  %s2 = inlined_call_operand.hbm [shape: f32[2,2,8,128], index: 2, kind: output, shape index: {}]
  %s3 = sld [smem:[#allocation0]]
  $region53: #{tpu_custom_call.1} parent=0
    _
  %s5 = ssub.s32 1, %s3
  %s6 = scalar_select 0, %s5, %s3
  $region1: #{tpu_custom_call.1} parent=0
    #allocation2 [shape = 'u8[131072]{0}', space=vmem, size = 0x20000, scoped, tag = 'input window, operand 0']
    #allocation3 [shape = 's32[2]{0}', space=sflag, size = 0x8, scoped, tag = 'scoped memory for tpu_custom_call.1']
    #allocation4 [shape = 's32[2]{0}', space=sflag, size = 0x8, scoped, tag = 'scoped memory for tpu_custom_call.1']
    #allocation5 [shape = 'u8[16384]{0}', space=vmem, size = 0x4000, scoped, tag = 'input window, operand 1']
    #allocation6 [shape = 's32[2]{0}', space=sflag, size = 0x8, scoped, tag = 'scoped memory for tpu_custom_call.1']
    #allocation7 [shape = 'u8[8192]{0}', space=vmem, size = 0x2000, scoped, tag = 'output window, operand 0']
    %7 = vsyncpa [#allocation3], 0
    %s8 = scalar_lea.sflag [#allocation3], 1
    %9 = vsyncpa %s8, 0
    %10 = vsyncpa [#allocation6], 0
    %s11 = scalar_lea.sflag [#allocation6], 1
    %12 = vsyncpa %s11, 0
    %13 = vsyncpa [#allocation4], 0
    %s14 = scalar_lea.sflag [#allocation4], 1
    %15 = vsyncpa %s14, 0
    loop: start=0, step=1, limit=6
    $region2: #{tpu_custom_call.1} parent=1 // loop_pre_header
      _
    $region3: #{tpu_custom_call.1} parent=1 // loop_header
      %s17 = sphi 0, %s21
      %p18 = scmp.ge.s32.totalorder %s17, 6
      %s24 = sphi 0, %s43
      %s25 = sphi 0, %s39
      %s26 = sphi 0, %s35
      %s27 = sphi 0, %s24
      %s28 = sphi 0, %s25
      %s29 = sphi 0, %s26
      %s30 = sphi 0, %s27
      %s31 = sphi 0, %s28
      %s32 = sphi 0, %s29
      %s50 = sphi 0, %s52
      %s53 = sphi 0, %s50
      %s54 = sphi 0, %s53
      %s70 = sphi 0, %s54
      %s80 = sphi 0, %s82
      %s83 = sphi 0, %s80
      %s84 = sphi 0, %s83
      %s100 = sphi 0, %s84
      %s108 = sphi 0, %s110
      %s111 = sphi 0, %s108
      %s112 = sphi 0, %s111
      %s128 = sphi 0, %s112
    $region4: #{tpu_custom_call.1} parent=1 // loop_header_branch
      %20 = sbr.rel (%p18) target = $region8
    $region5: #{tpu_custom_call.1} parent=1 // loop_body
      %s22 = ssub.s32 %s17, 1
      %s23 = ssub.s32 %s17, 2
      %s33 = sadd.s32 1, %s26
      %p34 = scmp.ge.s32.totalorder %s33, 1
      %s35 = scalar_select %p34, 0, %s33
      %s36 = sadd.s32 1, %s25
      %s37 = scalar_select %p34, %s36, %s25
      %p38 = scmp.ge.s32.totalorder %s37, 2
      %s39 = scalar_select %p38, 0, %s37
      %s40 = sadd.s32 1, %s24
      %s41 = scalar_select %p38, %s40, %s24
      %p42 = scmp.ge.s32.totalorder %s41, 2
      %s43 = scalar_select %p42, 0, %s41
      %s44 = sadd.s32 %s25, %s26
      %s45 = sadd.s32 %s39, %s35
      %s46 = ssub.s32 %s24, %s43
      %s47 = ssub.s32 %s44, %s45
      %s48 = sor.u32 %s46, %s47
      %p49 = scmp.eq.s32.totalorder %s48, 0
      %s51 = sadd.s32 %s50, 1
      %s52 = scalar_select %p49, %s50, %s51
      %p55 = pneg %p49
      %p56 = scmp.eq.s32.totalorder %s17, 3
      %p57 = por %p55, %p56
      %p58 = scmp.ne.s32.totalorder %s50, %s53
      %p59 = scmp.eq.s32.totalorder %s17, 0
      %p60 = por %p58, %p59
      %p61 = scmp.ne.s32.totalorder %s50, %s53
      %p62 = scmp.eq.s32.totalorder %s22, 3
      %p63 = por %p61, %p62
      %p64 = scmp.ne.s32.totalorder %s53, %s54
      %p65 = scmp.eq.s32.totalorder %s22, 0
      %p66 = por %p64, %p65
      %p67 = scmp.ne.s32.totalorder %s53, %s54
      %p68 = scmp.eq.s32.totalorder %s23, 3
      %p69 = por %p67, %p68
      %p71 = scmp.ne.s32.totalorder %s54, %s70
      %p72 = scmp.eq.s32.totalorder %s23, 0
      %p73 = por %p71, %p72
      %s74 = sadd.s32 %s25, %s26
      %s75 = sadd.s32 %s39, %s35
      %s76 = ssub.s32 %s24, %s43
      %s77 = ssub.s32 %s74, %s75
      %s78 = sor.u32 %s76, %s77
      %p79 = scmp.eq.s32.totalorder %s78, 0
      %s81 = sadd.s32 %s80, 1
      %s82 = scalar_select %p79, %s80, %s81
      %p85 = pneg %p79
      %p86 = scmp.eq.s32.totalorder %s17, 3
      %p87 = por %p85, %p86
      %p88 = scmp.ne.s32.totalorder %s80, %s83
      %p89 = scmp.eq.s32.totalorder %s17, 0
      %p90 = por %p88, %p89
      %p91 = scmp.ne.s32.totalorder %s80, %s83
      %p92 = scmp.eq.s32.totalorder %s22, 3
      %p93 = por %p91, %p92
      %p94 = scmp.ne.s32.totalorder %s83, %s84
      %p95 = scmp.eq.s32.totalorder %s22, 0
      %p96 = por %p94, %p95
      %p97 = scmp.ne.s32.totalorder %s83, %s84
      %p98 = scmp.eq.s32.totalorder %s23, 3
      %p99 = por %p97, %p98
      %p101 = scmp.ne.s32.totalorder %s84, %s100
      %p102 = scmp.eq.s32.totalorder %s23, 0
      %p103 = por %p101, %p102
      %s104 = ssub.s32 %s24, %s43
      %s105 = ssub.s32 %s25, %s39
      %s106 = sor.u32 %s104, %s105
      %p107 = scmp.eq.s32.totalorder %s106, 0
      %s109 = sadd.s32 %s108, 1
      %s110 = scalar_select %p107, %s108, %s109
      %p113 = pneg %p107
      %p114 = scmp.eq.s32.totalorder %s17, 3
      %p115 = por %p113, %p114
      %p116 = scmp.ne.s32.totalorder %s108, %s111
      %p117 = scmp.eq.s32.totalorder %s17, 0
      %p118 = por %p116, %p117
      %p119 = scmp.ne.s32.totalorder %s108, %s111
      %p120 = scmp.eq.s32.totalorder %s22, 3
      %p121 = por %p119, %p120
      %p122 = scmp.ne.s32.totalorder %s111, %s112
      %p123 = scmp.eq.s32.totalorder %s22, 0
      %p124 = por %p122, %p123
      %p125 = scmp.ne.s32.totalorder %s111, %s112
      %p126 = scmp.eq.s32.totalorder %s23, 3
      %p127 = por %p125, %p126
      %p129 = scmp.ne.s32.totalorder %s112, %s128
      %p130 = scmp.eq.s32.totalorder %s23, 0
      %p131 = por %p129, %p130
      %p132 = scmp.le.s32.totalorder 1, %s17
      %p133 = scmp.lt.s32.totalorder %s17, 5
      %p134 = pnand %p132, %p133
      %p135 = pneg %p134
      // Predicated region
      $region9: #{tpu_custom_call.1} parent=5 // pred_check
        _
      $region10: #{tpu_custom_call.1} parent=5 // pred_check_branch
        %137 = sbr.rel (%p134) target = $region12
      $region11: #{tpu_custom_call.1} parent=5 // pred_region
        %s138 = ssub.s32 %s17, 1
      $region12: #{tpu_custom_call.1} parent=5 // pred_fallthru
        _
      %p139 = scmp.lt.s32.totalorder %s17, 4
      // Predicated region
      $region13: #{tpu_custom_call.1} parent=5 // pred_check
        %p140 = pneg %p139
      $region14: #{tpu_custom_call.1} parent=5 // pred_check_branch
        %142 = sbr.rel (%p140) target = $region16
      $region15: #{tpu_custom_call.1} parent=5 // pred_region
        // Predicated region
        $region17: #{tpu_custom_call.1} parent=15 // pred_check
          %p143 = pneg %p60
        $region18: #{tpu_custom_call.1} parent=15 // pred_check_branch
          %145 = sbr.rel (%p143) target = $region20
        $region19: #{tpu_custom_call.1} parent=15 // pred_region
          #allocation9 [shape = 'u32[6]{0}', space=smem, size = 0x18, scoped, tag = 'DMA stride descriptor']
          %s146 = sand.u32 %s50, 1
          %s147 = scalar_lea.sflag [#allocation3], %s146
          %s148 = sand.u32 %s50, 1
          %s149 = smul.addr %s148, 128
          %s150 = scalar_lea.vmem [#allocation2], %s149
          %s151 = sadd.s32 %s25, %s26
          %s152 = smul.u32 4, %s151
          %154 = vsyncadd %s147, 0
          %s155 = smul.addr %s152, 2
          %s156 = smul.addr %s24, 32
          %s157 = sadd.s32 %s155, %s156
          %s158 = smul.addr %s157, 8
          %s159 = scalar_lea.hbm %s0, %s158
          %s161 = sshll.u32 1, 14
          %s162 = sxor.u32 4294967295, %s161
          %s164 = sld [smem:[#allocation0]]
          %s165 = sadd.s32 2, %s164
          %s167 = sshll.u32 7, 26
          %s168 = sxor.u32 4294967295, %s167
          %s169 = sand.u32 0, %s168
          %s170 = sshll.u32 %s165, 26
          %s171 = sor.u32 %s169, %s170
          %s172 = sshll.u32 %s159, 4
          %s173 = int_to_ptr.hbm [resolvable:$true] %s172
          %s174 = sshll.u32 %s150, 4
          %s175 = int_to_ptr.vmem [resolvable:$true] %s174
          %181 = sst [smem:[#allocation9]] 2048
          %s182 = scalar_lea.smem [#allocation9], 1
          %183 = sst [smem:[%s182]] 1024
          %s184 = scalar_lea.smem [#allocation9], 2
          %185 = sst [smem:[%s184]] 4
          %s186 = scalar_lea.smem [#allocation9], 3
          %187 = sst [smem:[%s186]] 256
          %s188 = scalar_lea.smem [#allocation9], 4
          %189 = sst [smem:[%s188]] 256
          %s190 = scalar_lea.smem [#allocation9], 5
          %191 = sst [smem:[%s190]] 16
          %193 = dma.general %s173, 2048, %s175, %s147, [#allocation8], [#allocation9], %s171, 0
        $region20: #{tpu_custom_call.1} parent=15 // pred_fallthru
          _
        // Predicated region
        $region21: #{tpu_custom_call.1} parent=15 // pred_check
          %p194 = pneg %p90
        $region22: #{tpu_custom_call.1} parent=15 // pred_check_branch
          %196 = sbr.rel (%p194) target = $region24
        $region23: #{tpu_custom_call.1} parent=15 // pred_region
          %s197 = sand.u32 %s80, 1
          %s198 = scalar_lea.sflag [#allocation6], %s197
          %s199 = sand.u32 %s80, 1
          %s200 = smul.addr %s199, 16
          %s201 = scalar_lea.vmem [#allocation5], %s200
          %s202 = sadd.s32 %s25, %s26
          %204 = vsyncadd %s198, 0
          %s205 = smul.addr %s202, 2
          %s206 = smul.addr %s24, 4
          %s207 = sadd.s32 %s205, %s206
          %s208 = smul.addr %s207, 8
          %s209 = scalar_lea.hbm %s1, %s208
          %s211 = sshll.u32 %s209, 4
          %s212 = int_to_ptr.hbm [resolvable:$true] %s211
          %s213 = sshll.u32 %s201, 4
          %s214 = int_to_ptr.vmem [resolvable:$true] %s213
          %216 = dma.hbm_to_vmem [thread:$0]  %s212, 256, %s214, %s198
        $region24: #{tpu_custom_call.1} parent=15 // pred_fallthru
          _
      $region16: #{tpu_custom_call.1} parent=5 // pred_fallthru
        _
      %p217 = scmp.le.s32.totalorder 1, %s17
      %p218 = scmp.lt.s32.totalorder %s17, 5
      %p219 = pnand %p217, %p218
      %p220 = pneg %p219
      // Predicated region
      $region25: #{tpu_custom_call.1} parent=5 // pred_check
        _
      $region26: #{tpu_custom_call.1} parent=5 // pred_check_branch
        %222 = sbr.rel (%p219) target = $region28
      $region27: #{tpu_custom_call.1} parent=5 // pred_region
        %s223 = ssub.s32 %s17, 1
        %s224 = sand.u32 %s53, 1
        %s225 = scalar_lea.sflag [#allocation3], %s224
        %s226 = sand.u32 %s53, 1
        %s227 = smul.addr %s226, 128
        %s228 = scalar_lea.vmem [#allocation2], %s227
        // Predicated region
        $region29: #{tpu_custom_call.1} parent=27 // pred_check
          %p229 = pneg %p66
        $region30: #{tpu_custom_call.1} parent=27 // pred_check_branch
          %231 = sbr.rel (%p229) target = $region32
        $region31: #{tpu_custom_call.1} parent=27 // pred_region
          %233 = dma.done %s225, 2048
        $region32: #{tpu_custom_call.1} parent=27 // pred_fallthru
          _
        %s234 = sand.u32 %s83, 1
        %s235 = scalar_lea.sflag [#allocation6], %s234
        %s236 = sand.u32 %s83, 1
        %s237 = smul.addr %s236, 16
        %s238 = scalar_lea.vmem [#allocation5], %s237
        // Predicated region
        $region33: #{tpu_custom_call.1} parent=27 // pred_check
          %p239 = pneg %p96
        $region34: #{tpu_custom_call.1} parent=27 // pred_check_branch
          %241 = sbr.rel (%p239) target = $region36
        $region35: #{tpu_custom_call.1} parent=27 // pred_region
          %243 = dma.done %s235, 256
        $region36: #{tpu_custom_call.1} parent=27 // pred_fallthru
          _
        %s244 = sand.u32 %s53, 1
        %s245 = scalar_lea.sflag [#allocation3], %s244
        %s246 = sand.u32 %s53, 1
        %s247 = smul.addr %s246, 128
        %s248 = scalar_lea.vmem [#allocation2], %s247
        %p249 = pneg %p66
        %p250 = pneg %p63
        %s251 = sand.u32 %s83, 1
        %s252 = scalar_lea.sflag [#allocation6], %s251
        %s253 = sand.u32 %s83, 1
        %s254 = smul.addr %s253, 16
        %s255 = scalar_lea.vmem [#allocation5], %s254
        %p256 = pneg %p96
        %p257 = pneg %p93
        %p258 = pneg %p124
        %p259 = pneg %p121
        %s260 = sand.u32 %s111, 1
        %s261 = scalar_lea.sflag [#allocation4], %s260
        %s262 = sand.u32 %s111, 1
        %s263 = smul.addr %s262, 8
        %s264 = scalar_lea.vmem [#allocation7], %s263
        %s265 = sadd.s32 %s28, %s29
        %s266 = smul.u32 4, %s265
        %s267 = sadd.s32 %s28, %s29
        %p268 = scmp.eq.s32.totalorder %s29, 0
        // Predicated region
        $region37: #{tpu_custom_call.1} parent=27 // pred_check
          %p269 = pneg %p268
        $region38: #{tpu_custom_call.1} parent=27 // pred_check_branch
          %271 = sbr.rel (%p269) target = $region40
        $region39: #{tpu_custom_call.1} parent=27 // pred_region
          %272 = vst [vmem:[%s264] sm:$0xff] 0.0
        $region40: #{tpu_custom_call.1} parent=27 // pred_fallthru
          _
        %v273 = vld [vmem:[%s228] sm:$0xff]
        %v274 = vld [vmem:[%s228 + $0x8] sm:$0xff]
        %v275 = vld [vmem:[%s228 + $0x10] sm:$0xff]
        %v276 = vld [vmem:[%s228 + $0x18] sm:$0xff]
        %v277 = vld [vmem:[%s228 + $0x20] sm:$0xff]
        %v278 = vld [vmem:[%s228 + $0x28] sm:$0xff]
        %v279 = vld [vmem:[%s228 + $0x30] sm:$0xff]
        %v280 = vld [vmem:[%s228 + $0x38] sm:$0xff]
        %s281 = scalar_lea.vmem %s228, 64 [#allocation2]
        %v282 = vld [vmem:[%s281] sm:$0xff]
        %v283 = vld [vmem:[%s281 + $0x8] sm:$0xff]
        %v284 = vld [vmem:[%s281 + $0x10] sm:$0xff]
        %v285 = vld [vmem:[%s281 + $0x18] sm:$0xff]
        %v286 = vld [vmem:[%s281 + $0x20] sm:$0xff]
        %v287 = vld [vmem:[%s281 + $0x28] sm:$0xff]
        %v288 = vld [vmem:[%s281 + $0x30] sm:$0xff]
        %v289 = vld [vmem:[%s281 + $0x38] sm:$0xff]
        %v290 = vld [vmem:[%s238] sm:$0xff]
        %v291 = vld [vmem:[%s238 + $0x8] sm:$0xff]
        %v292 = vunpack.c.0.s8 %v290
        %v293 = vunpack.c.0.s8 %v291
        %v294 = vunpack.c.1.s8 %v290
        %v295 = vunpack.c.1.s8 %v291
        %v296 = vunpack.c.2.s8 %v290
        %v297 = vunpack.c.2.s8 %v291
        %v298 = vunpack.c.3.s8 %v290
        %v299 = vunpack.c.3.s8 %v291
        %v300 = vcvt.s32.f32 %v292
        %v301 = vcvt.s32.f32 %v293
        %v302 = vcvt.s32.f32 %v294
        %v303 = vcvt.s32.f32 %v295
        %v304 = vcvt.s32.f32 %v296
        %v305 = vcvt.s32.f32 %v297
        %v306 = vcvt.s32.f32 %v298
        %v307 = vcvt.s32.f32 %v299
        %vm308 = vcmp.gt.f32.partialorder %v300, 0.0
        %vm309 = vcmp.gt.f32.partialorder %v301, 0.0
        %vm310 = vcmp.gt.f32.partialorder %v302, 0.0
        %vm311 = vcmp.gt.f32.partialorder %v303, 0.0
        %vm312 = vcmp.gt.f32.partialorder %v304, 0.0
        %vm313 = vcmp.gt.f32.partialorder %v305, 0.0
        %vm314 = vcmp.gt.f32.partialorder %v306, 0.0
        %vm315 = vcmp.gt.f32.partialorder %v307, 0.0
        %vm316 = vcmp.gt.f32.partialorder %v300, 1.0
        %vm317 = vcmp.gt.f32.partialorder %v301, 1.0
        %vm318 = vcmp.gt.f32.partialorder %v302, 1.0
        %vm319 = vcmp.gt.f32.partialorder %v303, 1.0
        %vm320 = vcmp.gt.f32.partialorder %v304, 1.0
        %vm321 = vcmp.gt.f32.partialorder %v305, 1.0
        %vm322 = vcmp.gt.f32.partialorder %v306, 1.0
        %vm323 = vcmp.gt.f32.partialorder %v307, 1.0
        %v324 = vsel %vm308, 1, 0
        %v325 = vsel %vm309, 1, 0
        %v326 = vsel %vm310, 1, 0
        %v327 = vsel %vm311, 1, 0
        %v328 = vsel %vm312, 1, 0
        %v329 = vsel %vm313, 1, 0
        %v330 = vsel %vm314, 1, 0
        %v331 = vsel %vm315, 1, 0
        %v332 = vcvt.s32.f32 %v324
        %v333 = vcvt.s32.f32 %v325
        %v334 = vcvt.s32.f32 %v326
        %v335 = vcvt.s32.f32 %v327
        %v336 = vcvt.s32.f32 %v328
        %v337 = vcvt.s32.f32 %v329
        %v338 = vcvt.s32.f32 %v330
        %v339 = vcvt.s32.f32 %v331
        %v340 = vsel %vm316, 1, 0
        %v341 = vsel %vm317, 1, 0
        %v342 = vsel %vm318, 1, 0
        %v343 = vsel %vm319, 1, 0
        %v344 = vsel %vm320, 1, 0
        %v345 = vsel %vm321, 1, 0
        %v346 = vsel %vm322, 1, 0
        %v347 = vsel %vm323, 1, 0
        %v348 = vcvt.s32.f32 %v340
        %v349 = vcvt.s32.f32 %v341
        %v350 = vcvt.s32.f32 %v342
        %v351 = vcvt.s32.f32 %v343
        %v352 = vcvt.s32.f32 %v344
        %v353 = vcvt.s32.f32 %v345
        %v354 = vcvt.s32.f32 %v346
        %v355 = vcvt.s32.f32 %v347
        %v356 = vsub.f32 1.0, %v273
        %v357 = vsub.f32 1.0, %v274
        %v358 = vsub.f32 1.0, %v275
        %v359 = vsub.f32 1.0, %v276
        %v360 = vsub.f32 1.0, %v277
        %v361 = vsub.f32 1.0, %v278
        %v362 = vsub.f32 1.0, %v279
        %v363 = vsub.f32 1.0, %v280
        %v364 = vsel %vm308, %v273, %v356
        %v365 = vsel %vm309, %v274, %v357
        %v366 = vsel %vm310, %v275, %v358
        %v367 = vsel %vm311, %v276, %v359
        %v368 = vsel %vm312, %v277, %v360
        %v369 = vsel %vm313, %v278, %v361
        %v370 = vsel %vm314, %v279, %v362
        %v371 = vsel %vm315, %v280, %v363
        %v372 = vadd.f32 %v364, 1e-06
        %v373 = vadd.f32 %v365, 1e-06
        %v374 = vadd.f32 %v366, 1e-06
        %v375 = vadd.f32 %v367, 1e-06
        %v376 = vadd.f32 %v368, 1e-06
        %v377 = vadd.f32 %v369, 1e-06
        %v378 = vadd.f32 %v370, 1e-06
        %v379 = vadd.f32 %v371, 1e-06
        %v380 = vlog2.pop %v372
        %v381 = vmul.f32 %v380, 0.6931472
        %v382 = vlog2.pop %v373
        %v383 = vmul.f32 %v382, 0.6931472
        %v384 = vlog2.pop %v374
        %v385 = vmul.f32 %v384, 0.6931472
        %v386 = vlog2.pop %v375
        %v387 = vmul.f32 %v386, 0.6931472
        %v388 = vlog2.pop %v376
        %v389 = vmul.f32 %v388, 0.6931472
        %v390 = vlog2.pop %v377
        %v391 = vmul.f32 %v390, 0.6931472
        %v392 = vlog2.pop %v378
        %v393 = vmul.f32 %v392, 0.6931472
        %v394 = vlog2.pop %v379
        %v395 = vmul.f32 %v394, 0.6931472
        %v396 = vsub.f32 1.0, %v282
        %v397 = vsub.f32 1.0, %v283
        %v398 = vsub.f32 1.0, %v284
        %v399 = vsub.f32 1.0, %v285
        %v400 = vsub.f32 1.0, %v286
        %v401 = vsub.f32 1.0, %v287
        %v402 = vsub.f32 1.0, %v288
        %v403 = vsub.f32 1.0, %v289
        %v404 = vsel %vm316, %v282, %v396
        %v405 = vsel %vm317, %v283, %v397
        %v406 = vsel %vm318, %v284, %v398
        %v407 = vsel %vm319, %v285, %v399
        %v408 = vsel %vm320, %v286, %v400
        %v409 = vsel %vm321, %v287, %v401
        %v410 = vsel %vm322, %v288, %v402
        %v411 = vsel %vm323, %v289, %v403
        %v412 = vadd.f32 %v404, 1e-06
        %v413 = vadd.f32 %v405, 1e-06
        %v414 = vadd.f32 %v406, 1e-06
        %v415 = vadd.f32 %v407, 1e-06
        %v416 = vadd.f32 %v408, 1e-06
        %v417 = vadd.f32 %v409, 1e-06
        %v418 = vadd.f32 %v410, 1e-06
        %v419 = vadd.f32 %v411, 1e-06
        %v420 = vlog2.pop %v412
        %v421 = vmul.f32 %v420, 0.6931472
        %v422 = vlog2.pop %v413
        %v423 = vmul.f32 %v422, 0.6931472
        %v424 = vlog2.pop %v414
        %v425 = vmul.f32 %v424, 0.6931472
        %v426 = vlog2.pop %v415
        %v427 = vmul.f32 %v426, 0.6931472
        %v428 = vlog2.pop %v416
        %v429 = vmul.f32 %v428, 0.6931472
        %v430 = vlog2.pop %v417
        %v431 = vmul.f32 %v430, 0.6931472
        %v432 = vlog2.pop %v418
        %v433 = vmul.f32 %v432, 0.6931472
        %v434 = vlog2.pop %v419
        %v435 = vmul.f32 %v434, 0.6931472
        %v436 = vmul.f32 %v348, %v282
        %v437 = vmul.f32 %v349, %v283
        %v438 = vmul.f32 %v350, %v284
        %v439 = vmul.f32 %v351, %v285
        %v440 = vmul.f32 %v352, %v286
        %v441 = vmul.f32 %v353, %v287
        %v442 = vmul.f32 %v354, %v288
        %v443 = vmul.f32 %v355, %v289
        %v444 = vmul.f32 %v332, %v273
        %v445 = vmul.f32 %v333, %v274
        %v446 = vmul.f32 %v334, %v275
        %v447 = vmul.f32 %v335, %v276
        %v448 = vmul.f32 %v336, %v277
        %v449 = vmul.f32 %v337, %v278
        %v450 = vmul.f32 %v338, %v279
        %v451 = vmul.f32 %v339, %v280
        %v452 = vadd.f32 %v436, %v444
        %v453 = vadd.f32 %v437, %v445
        %v454 = vadd.f32 %v438, %v446
        %v455 = vadd.f32 %v439, %v447
        %v456 = vadd.f32 %v440, %v448
        %v457 = vadd.f32 %v441, %v449
        %v458 = vadd.f32 %v442, %v450
        %v459 = vadd.f32 %v443, %v451
        %vm460 = vcmp.gt.f32.partialorder %v452, 0.5
        %vm461 = vcmp.gt.f32.partialorder %v453, 0.5
        %vm462 = vcmp.gt.f32.partialorder %v454, 0.5
        %vm463 = vcmp.gt.f32.partialorder %v455, 0.5
        %vm464 = vcmp.gt.f32.partialorder %v456, 0.5
        %vm465 = vcmp.gt.f32.partialorder %v457, 0.5
        %vm466 = vcmp.gt.f32.partialorder %v458, 0.5
        %vm467 = vcmp.gt.f32.partialorder %v459, 0.5
        %v468 = vadd.f32 %v452, 1e-06
        %v469 = vadd.f32 %v453, 1e-06
        %v470 = vadd.f32 %v454, 1e-06
        %v471 = vadd.f32 %v455, 1e-06
        %v472 = vadd.f32 %v456, 1e-06
        %v473 = vadd.f32 %v457, 1e-06
        %v474 = vadd.f32 %v458, 1e-06
        %v475 = vadd.f32 %v459, 1e-06
        %v476 = vlog2.pop %v468
        %v477 = vmul.f32 %v476, 0.6931472
        %v478 = vlog2.pop %v469
        %v479 = vmul.f32 %v478, 0.6931472
        %v480 = vlog2.pop %v470
        %v481 = vmul.f32 %v480, 0.6931472
        %v482 = vlog2.pop %v471
        %v483 = vmul.f32 %v482, 0.6931472
        %v484 = vlog2.pop %v472
        %v485 = vmul.f32 %v484, 0.6931472
        %v486 = vlog2.pop %v473
        %v487 = vmul.f32 %v486, 0.6931472
        %v488 = vlog2.pop %v474
        %v489 = vmul.f32 %v488, 0.6931472
        %v490 = vlog2.pop %v475
        %v491 = vmul.f32 %v490, 0.6931472
        %v492 = vmul.f32 %v452, 2.0
        %v493 = vmul.f32 %v453, 2.0
        %v494 = vmul.f32 %v454, 2.0
        %v495 = vmul.f32 %v455, 2.0
        %v496 = vmul.f32 %v456, 2.0
        %v497 = vmul.f32 %v457, 2.0
        %v498 = vmul.f32 %v458, 2.0
        %v499 = vmul.f32 %v459, 2.0
        %v500 = vmul.f32 %v492, %v452
        %v501 = vmul.f32 %v493, %v453
        %v502 = vmul.f32 %v494, %v454
        %v503 = vmul.f32 %v495, %v455
        %v504 = vmul.f32 %v496, %v456
        %v505 = vmul.f32 %v497, %v457
        %v506 = vmul.f32 %v498, %v458
        %v507 = vmul.f32 %v499, %v459
        %v508 = vadd.f32 %v500, -1.1931472
        %v509 = vadd.f32 %v501, -1.1931472
        %v510 = vadd.f32 %v502, -1.1931472
        %v511 = vadd.f32 %v503, -1.1931472
        %v512 = vadd.f32 %v504, -1.1931472
        %v513 = vadd.f32 %v505, -1.1931472
        %v514 = vadd.f32 %v506, -1.1931472
        %v515 = vadd.f32 %v507, -1.1931472
        %v516 = vsel %vm460, %v477, %v508
        %v517 = vsel %vm461, %v479, %v509
        %v518 = vsel %vm462, %v481, %v510
        %v519 = vsel %vm463, %v483, %v511
        %v520 = vsel %vm464, %v485, %v512
        %v521 = vsel %vm465, %v487, %v513
        %v522 = vsel %vm466, %v489, %v514
        %v523 = vsel %vm467, %v491, %v515
        %v524 = vmul.f32 %v332, %v381
        %v525 = vmul.f32 %v333, %v383
        %v526 = vmul.f32 %v334, %v385
        %v527 = vmul.f32 %v335, %v387
        %v528 = vmul.f32 %v336, %v389
        %v529 = vmul.f32 %v337, %v391
        %v530 = vmul.f32 %v338, %v393
        %v531 = vmul.f32 %v339, %v395
        %v532 = vadd.f32 %v524, %v525
        %v533 = vadd.f32 %v532, %v526
        %v534 = vadd.f32 %v533, %v527
        %v535 = vadd.f32 %v534, %v528
        %v536 = vadd.f32 %v535, %v529
        %v537 = vadd.f32 %v536, %v530
        %v538 = vadd.f32 %v537, %v531
        %539 = vadd.xlane.f32.xlu0 %v538
        %v540 = vpop.xlane.xlu0 %539
        %v541 = vrot.slane %v540, 4
        %v542 = vadd.f32 %v540, %v541
        %v543 = vrot.slane %v542, 2
        %v544 = vadd.f32 %v542, %v543
        %v545 = vrot.slane %v544, 1
        %v546 = vadd.f32 %v544, %v545
        %s547 = vtos %v546
        %v548 = vadd.f32 %v381, %v383
        %v549 = vadd.f32 %v548, %v385
        %v550 = vadd.f32 %v549, %v387
        %v551 = vadd.f32 %v550, %v389
        %v552 = vadd.f32 %v551, %v391
        %v553 = vadd.f32 %v552, %v393
        %v554 = vadd.f32 %v553, %v395
        %555 = vadd.xlane.f32.xlu0 %v554
        %v556 = vpop.xlane.xlu0 %555
        %v557 = vrot.slane %v556, 4
        %v558 = vadd.f32 %v556, %v557
        %v559 = vrot.slane %v558, 2
        %v560 = vadd.f32 %v558, %v559
        %v561 = vrot.slane %v560, 1
        %v562 = vadd.f32 %v560, %v561
        %s563 = vtos %v562
        %s564 = ssub.f32 %s563, %s547
        %v565 = vmul.f32 %v348, %v421
        %v566 = vmul.f32 %v349, %v423
        %v567 = vmul.f32 %v350, %v425
        %v568 = vmul.f32 %v351, %v427
        %v569 = vmul.f32 %v352, %v429
        %v570 = vmul.f32 %v353, %v431
        %v571 = vmul.f32 %v354, %v433
        %v572 = vmul.f32 %v355, %v435
        %v573 = vadd.f32 %v565, %v566
        %v574 = vadd.f32 %v573, %v567
        %v575 = vadd.f32 %v574, %v568
        %v576 = vadd.f32 %v575, %v569
        %v577 = vadd.f32 %v576, %v570
        %v578 = vadd.f32 %v577, %v571
        %v579 = vadd.f32 %v578, %v572
        %580 = vadd.xlane.f32.xlu0 %v579
        %v581 = vpop.xlane.xlu0 %580
        %v582 = vrot.slane %v581, 4
        %v583 = vadd.f32 %v581, %v582
        %v584 = vrot.slane %v583, 2
        %v585 = vadd.f32 %v583, %v584
        %v586 = vrot.slane %v585, 1
        %v587 = vadd.f32 %v585, %v586
        %s588 = vtos %v587
        %v589 = vadd.f32 %v421, %v423
        %v590 = vadd.f32 %v589, %v425
        %v591 = vadd.f32 %v590, %v427
        %v592 = vadd.f32 %v591, %v429
        %v593 = vadd.f32 %v592, %v431
        %v594 = vadd.f32 %v593, %v433
        %v595 = vadd.f32 %v594, %v435
        %596 = vadd.xlane.f32.xlu0 %v595
        %v597 = vpop.xlane.xlu0 %596
        %v598 = vrot.slane %v597, 4
        %v599 = vadd.f32 %v597, %v598
        %v600 = vrot.slane %v599, 2
        %v601 = vadd.f32 %v599, %v600
        %v602 = vrot.slane %v601, 1
        %v603 = vadd.f32 %v601, %v602
        %s604 = vtos %v603
        %s605 = ssub.f32 %s604, %s588
        %v606 = vadd.f32 %v332, %v333
        %v607 = vadd.f32 %v606, %v334
        %v608 = vadd.f32 %v607, %v335
        %v609 = vadd.f32 %v608, %v336
        %v610 = vadd.f32 %v609, %v337
        %v611 = vadd.f32 %v610, %v338
        %v612 = vadd.f32 %v611, %v339
        %613 = vadd.xlane.f32.xlu0 %v612
        %v614 = vpop.xlane.xlu0 %613
        %v615 = vrot.slane %v614, 4
        %v616 = vadd.f32 %v614, %v615
        %v617 = vrot.slane %v616, 2
        %v618 = vadd.f32 %v616, %v617
        %v619 = vrot.slane %v618, 1
        %v620 = vadd.f32 %v618, %v619
        %s621 = vtos %v620
        %v622 = vadd.f32 %v348, %v349
        %v623 = vadd.f32 %v622, %v350
        %v624 = vadd.f32 %v623, %v351
        %v625 = vadd.f32 %v624, %v352
        %v626 = vadd.f32 %v625, %v353
        %v627 = vadd.f32 %v626, %v354
        %v628 = vadd.f32 %v627, %v355
        %629 = vadd.xlane.f32.xlu0 %v628
        %v630 = vpop.xlane.xlu0 %629
        %v631 = vrot.slane %v630, 4
        %v632 = vadd.f32 %v630, %v631
        %v633 = vrot.slane %v632, 2
        %v634 = vadd.f32 %v632, %v633
        %v635 = vrot.slane %v634, 1
        %v636 = vadd.f32 %v634, %v635
        %s637 = vtos %v636
        %v638 = vadd.f32 %v516, %v517
        %v639 = vadd.f32 %v638, %v518
        %v640 = vadd.f32 %v639, %v519
        %v641 = vadd.f32 %v640, %v520
        %v642 = vadd.f32 %v641, %v521
        %v643 = vadd.f32 %v642, %v522
        %v644 = vadd.f32 %v643, %v523
        %645 = vadd.xlane.f32.xlu0 %v644
        %v646 = vpop.xlane.xlu0 %645
        %v647 = vrot.slane %v646, 4
        %v648 = vadd.f32 %v646, %v647
        %v649 = vrot.slane %v648, 2
        %v650 = vadd.f32 %v648, %v649
        %v651 = vrot.slane %v650, 1
        %v652 = vadd.f32 %v650, %v651
        %s653 = vtos %v652
        %v654 = vlaneseq
        %v655 = vshrl.u32 %v654, 7
        %vm656 = vcmp.eq.s32.totalorder %v655, 0
        %v657 = vstv %s547
        %v658 = vsel %vm656, %v657, 0.0
        %vm659 = vcmp.eq.s32.totalorder %v655, 1
        %v660 = vstv %s564
        %v661 = vsel %vm659, %v660, 0.0
        %v662 = vadd.f32 %v658, %v661
        %vm663 = vcmp.eq.s32.totalorder %v655, 2
        %v664 = vstv %s588
        %v665 = vsel %vm663, %v664, 0.0
        %v666 = vadd.f32 %v662, %v665
        %vm667 = vcmp.eq.s32.totalorder %v655, 3
        %v668 = vstv %s605
        %v669 = vsel %vm667, %v668, 0.0
        %v670 = vadd.f32 %v666, %v669
        %vm671 = vcmp.eq.s32.totalorder %v655, 4
        %v672 = vstv %s621
        %v673 = vsel %vm671, %v672, 0.0
        %v674 = vadd.f32 %v670, %v673
        %vm675 = vcmp.eq.s32.totalorder %v655, 5
        %v676 = vstv %s637
        %v677 = vsel %vm675, %v676, 0.0
        %v678 = vadd.f32 %v674, %v677
        %vm679 = vcmp.eq.s32.totalorder %v655, 6
        %v680 = vstv %s653
        %v681 = vsel %vm679, %v680, 0.0
        %v682 = vadd.f32 %v678, %v681
        %v683 = vld [vmem:[%s264] sm:$0xff]
        %v684 = vadd.f32 %v683, %v682
        %685 = vst [vmem:[%s264] sm:$0xff] %v684
        %s686 = sand.u32 %s111, 1
        %s687 = scalar_lea.sflag [#allocation4], %s686
        %s688 = sand.u32 %s111, 1
        %s689 = smul.addr %s688, 8
        %s690 = scalar_lea.vmem [#allocation7], %s689
        // Predicated region
        $region41: #{tpu_custom_call.1} parent=27 // pred_check
          %p691 = pneg %p121
        $region42: #{tpu_custom_call.1} parent=27 // pred_check_branch
          %693 = sbr.rel (%p691) target = $region44
        $region43: #{tpu_custom_call.1} parent=27 // pred_region
          %695 = vsyncadd %s687, 0
          %s696 = smul.addr %s27, 2
          %s697 = sadd.s32 %s28, %s696
          %s698 = smul.addr %s697, 8
          %s699 = scalar_lea.hbm %s2, %s698
          %s701 = sshll.u32 %s690, 4
          %s702 = int_to_ptr.vmem [resolvable:$true] %s701
          %s703 = sshll.u32 %s699, 4
          %s704 = int_to_ptr.hbm [resolvable:$true] %s703
          %706 = dma.vmem_to_hbm [thread:$0]  %s702, 128, %s704, %s687
        $region44: #{tpu_custom_call.1} parent=27 // pred_fallthru
          _
      $region28: #{tpu_custom_call.1} parent=5 // pred_fallthru
        _
      %p707 = scmp.le.s32.totalorder 2, %s17
      // Predicated region
      $region45: #{tpu_custom_call.1} parent=5 // pred_check
        %p708 = pneg %p707
      $region46: #{tpu_custom_call.1} parent=5 // pred_check_branch
        %710 = sbr.rel (%p708) target = $region48
      $region47: #{tpu_custom_call.1} parent=5 // pred_region
        %s711 = ssub.s32 %s17, 2
        // Predicated region
        $region49: #{tpu_custom_call.1} parent=47 // pred_check
          %p712 = pneg %p127
        $region50: #{tpu_custom_call.1} parent=47 // pred_check_branch
          %714 = sbr.rel (%p712) target = $region52
        $region51: #{tpu_custom_call.1} parent=47 // pred_region
          %s715 = sand.u32 %s112, 1
          %s716 = scalar_lea.sflag [#allocation4], %s715
          %s717 = sand.u32 %s112, 1
          %s718 = smul.addr %s717, 8
          %s719 = scalar_lea.vmem [#allocation7], %s718
          %721 = dma.done %s716, 128
        $region52: #{tpu_custom_call.1} parent=47 // pred_fallthru
          _
      $region48: #{tpu_custom_call.1} parent=5 // pred_fallthru
        _
    $region6: #{tpu_custom_call.1} parent=1 // loop_footer
      %s21 = sadd.s32 1, %s17
    $region7: #{tpu_custom_call.1} parent=1 // loop_footer_branch
      %16 = sbr.rel target = $region3
    $region8: #{tpu_custom_call.1} parent=1 // loop_exit
      _
    %722 = vsyncpa [#allocation3], 1
    %s723 = scalar_lea.sflag [#allocation3], 1
    %724 = vsyncpa %s723, 1
    %725 = vsyncpa [#allocation6], 1
    %s726 = scalar_lea.sflag [#allocation6], 1
    %727 = vsyncpa %s726, 1
    %728 = vsyncpa [#allocation4], 1
    %s729 = scalar_lea.sflag [#allocation4], 1
    %730 = vsyncpa %s729, 1

</llo_original>
